<compile_context>
chip_gen: v7x
topology: tpu7x:2x2x1
jax: 0.10.0
libtpu: 0.0.40
codegen_flags: <defaults>
</compile_context>

<pallas_src>
import functools

import jax
import jax.numpy as jnp
from jax import lax
from jax.experimental import pallas as pl
from jax.experimental.pallas import tpu as pltpu


_VMEM_BUDGET_BYTES = 48 * 1024 * 1024   # conservative working-set budget, fits v5e/v6e/v7x


def _vmem_bytes(Bblk, C, L, pad, K, cdt_bytes, out_bytes):
    """Rough VMEM working-set estimate for one grid step (bytes)."""
    Lp = L + 2 * pad
    x_blk = 2 * Bblk * C * L * cdt_bytes          # pipelined input block (double-buffered)
    o_blk = 2 * Bblk * C * L * out_bytes          # pipelined output block (double-buffered)
    ctx = Bblk * C * L * cdt_bytes                # context scratch (single buffer)
    xpad = C * Lp * cdt_bytes                     # padded conv staging scratch
    weights = (K * C * C + L * L) * cdt_bytes + (C + L) * 4   # single-buffered invariants
    temps = (3 * C * L + 2 * C * C) * 4           # per-b f32 temporaries (acc/y/ctx, s/att)
    fc_tmp = Bblk * C * L * 4                     # f32 fc result before the output cast
    return x_blk + o_blk + ctx + xpad + weights + temps + fc_tmp


def _choose_batch_block(bs, C, L, pad, K, cdt_bytes, out_bytes,
                        budget_bytes=_VMEM_BUDGET_BYTES, max_block=8):
    """Largest divisor of bs that fits the VMEM budget and (when bs >= 2) leaves >= 2
    grid steps so both v7x TensorCores still get work."""
    best = 1
    for d in range(1, min(bs, max_block) + 1):
        if bs % d:
            continue
        if bs >= 2 and bs // d < 2:
            continue
        if _vmem_bytes(d, C, L, pad, K, cdt_bytes, out_bytes) > budget_bytes:
            continue
        best = d
    return best


def _make_kernel(Bblk, C, L, K, pad, fast_math):
    inv_sqrt_dk = 1.0 / (float(L) ** 0.5)

    def kernel(x_ref, wk_ref, bc_ref, wft_ref, bf_ref, o_ref, xpad_ref, ctx_ref):
        # x_ref   : (Bblk, C, L)   unpadded input block (compute dtype), pipelined
        # wk_ref  : (K, C, C)      conv weight, tap-major (wk[k] = W[:, :, k]), VMEM-resident
        # bc_ref  : (C, 1)         conv bias (f32), VMEM-resident
        # wft_ref : (L, L)         fc_o weight, already transposed (W_fc^T), VMEM-resident
        # bf_ref  : (1, L)         fc_o bias (f32), VMEM-resident
        # o_ref   : (Bblk, C, L)   output block
        # xpad_ref: (C, L+2*pad)   zero-padded staging buffer for the conv tap shifts
        # ctx_ref : (Bblk, C, L)   per-batch attention contexts, staged for the batched fc
        bc = bc_ref[...]
        bf = bf_ref[...]

        # Only the `pad` edge columns must stay zero; the interior is overwritten per element.
        xpad_ref[...] = jnp.zeros_like(xpad_ref)

        @pl.loop(0, Bblk)
        def _(b):
            # Stage this batch element into the zero-padded VMEM buffer (keeps x lane-aligned
            # in HBM; the +/-pad tap shifts become cheap VMEM slice loads).
            xpad_ref[:, pad:pad + L] = x_ref[b]

            # ---- Conv1d as K shifted (C,C)@(C,L) MXU matmuls with f32 accumulation ----
            acc = jnp.zeros((C, L), dtype=jnp.float32)
            for k in range(K):                                   # K tiny & static -> unrolled
                acc = acc + jnp.dot(wk_ref[k], xpad_ref[:, k:k + L],
                                    preferred_element_type=jnp.float32)
            y = (acc + bc).astype(ctx_ref.dtype)                 # (C, L), compute dtype

            # ---- scores = (y @ y^T)/sqrt(L): contract last axes, no y.T materialization ----
            s = lax.dot_general(y, y, (((1,), (1,)), ((), ())),
                                preferred_element_type=jnp.float32) * inv_sqrt_dk

            # ---- numerically stable softmax over channels (f32) ----
            s = s - jnp.max(s, axis=-1, keepdims=True)
            p = jnp.exp(s)
            denom = jnp.sum(p, axis=-1, keepdims=True)
            att = p * pl.reciprocal(denom, approx=fast_math)     # (C, C) f32

            # ---- context = att @ y, staged for the block-batched fc matmul ----
            ctx = jnp.dot(att.astype(y.dtype), y, preferred_element_type=jnp.float32)
            ctx_ref[b] = ctx.astype(ctx_ref.dtype)

        # ---- fc_o batched over the whole block: one (Bblk*C, L) @ (L, L) MXU matmul ----
        ctx_all = ctx_ref[...].reshape(Bblk * C, L)
        res = jnp.dot(ctx_all, wft_ref[...], preferred_element_type=jnp.float32) + bf
        o_ref[...] = res.reshape(Bblk, C, L).astype(o_ref.dtype)

    return kernel


@functools.partial(jax.jit, static_argnames=("fast_math", "out_dtype"))
def channel_attention_1d(x, conv_w, conv_b, fc_w, fc_b, *, fast_math=True, out_dtype=None):
    """x: (bs, C, L). conv_w: (C, C, K). conv_b: (C,). fc_w: (L, L). fc_b: (L,)."""
    bs, C, L = x.shape
    K = conv_w.shape[-1]
    assert K % 2 == 1, "even kernel_size needs asymmetric padding (PyTorch pad=(K-1)//2)"
    pad = (K - 1) // 2
    cdt = jnp.bfloat16 if fast_math else jnp.float32
    odt = jnp.dtype(out_dtype) if out_dtype is not None else x.dtype
    cdt_bytes = jnp.dtype(cdt).itemsize
    out_bytes = jnp.dtype(odt).itemsize

    Bblk = _choose_batch_block(bs, C, L, pad, K, cdt_bytes, out_bytes)
    n_blocks = bs // Bblk

    # Wrapper-side (XLA) layout prep, done once:
    #   * conv weight tap-major (wk[k] = W[:, :, k]); fc weight pre-transposed (no in-kernel .T)
    #   * matmul operands cast to the compute dtype (bf16 in fast mode)
    #   * NOTE: x is NOT padded here -- padding happens in VMEM inside the kernel.
    xc = x.astype(cdt)                                         # (bs, C, L), lane-aligned
    wk = jnp.transpose(conv_w, (2, 0, 1)).astype(cdt)          # (K, C_out, C_in)
    bc = conv_b.reshape(C, 1).astype(jnp.float32)
    wft = fc_w.T.astype(cdt)                                   # (L, L) = W_fc^T
    bf = fc_b.reshape(1, L).astype(jnp.float32)

    kernel = _make_kernel(Bblk, C, L, K, pad, fast_math)

    est = _vmem_bytes(Bblk, C, L, pad, K, cdt_bytes, out_bytes)
    vmem_limit = int(min(64 << 20, max(32 << 20, int(est * 1.4))))

    flops = 2 * bs * (K * C * C * L + 2 * C * C * L + C * L * L)
    bytes_accessed = (bs * C * L * (cdt_bytes + out_bytes)
                      + (K * C * C + L * L) * cdt_bytes + (C + L) * 4)
    cost = pl.CostEstimate(flops=int(flops), transcendentals=int(bs * C * C),
                           bytes_accessed=int(bytes_accessed))

    vmem = pltpu.MemorySpace.VMEM
    return pl.pallas_call(
        kernel,
        out_shape=jax.ShapeDtypeStruct((bs, C, L), odt),
        grid_spec=pltpu.PrefetchScalarGridSpec(
            num_scalar_prefetch=0,
            grid=(n_blocks,),
            in_specs=[
                pl.BlockSpec((Bblk, C, L), lambda b: (b, 0, 0)),   # x block (pipelined)
                pl.BlockSpec(memory_space=vmem),   # conv weight (grid-invariant, single-buffered)
                pl.BlockSpec(memory_space=vmem),   # conv bias
                pl.BlockSpec(memory_space=vmem),   # fc weight^T (grid-invariant)
                pl.BlockSpec(memory_space=vmem),   # fc bias
            ],
            out_specs=pl.BlockSpec((Bblk, C, L), lambda b: (b, 0, 0)),
            scratch_shapes=[
                pltpu.VMEM((C, L + 2 * pad), cdt),                 # zero-padded conv staging
                pltpu.VMEM((Bblk, C, L), cdt),                     # contexts for the batched fc
            ],
        ),
        compiler_params=pltpu.CompilerParams(
            dimension_semantics=("parallel",),
            vmem_limit_bytes=vmem_limit,
        ),
        cost_estimate=cost,
    )(xc, wk, bc, wft, bf)


def _reference(x, conv_w, conv_b, fc_w, fc_b):
    """Pure-JAX (f32) reference for validation."""
    y = jax.lax.conv_general_dilated(
        x, conv_w, window_strides=(1,), padding="SAME",
        dimension_numbers=("NCH", "OIH", "NCH"),
    ) + conv_b[None, :, None]
    att = jnp.einsum("bcl,bdl->bcd", y, y) / jnp.sqrt(jnp.float32(x.shape[-1]))
    att = jax.nn.softmax(att, axis=-1)
    out = jnp.einsum("bcd,bdl->bcl", att, y)
    return jnp.einsum("bcl,ml->bcm", out, fc_w) + fc_b[None, None, :]


if __name__ == "__main__":
    # Small shapes consistent with the module: bs=4 exercises the batch-block path
    # (Bblk=2, grid=2) while staying tiny.
    bs, d_model, L, K = 4, 8, 16, 3

    key = jax.random.PRNGKey(0)
    k1, k2, k3, k4, k5 = jax.random.split(key, 5)

    x = jax.random.normal(k1, (bs, d_model, L), dtype=jnp.float32)
    conv_w = 0.1 * jax.random.normal(k2, (d_model, d_model, K), dtype=jnp.float32)
    conv_b = 0.1 * jax.random.normal(k3, (d_model,), dtype=jnp.float32)
    fc_w = 0.1 * jax.random.normal(k4, (L, L), dtype=jnp.float32)
    fc_b = 0.1 * jax.random.normal(k5, (L,), dtype=jnp.float32)

    ref = _reference(x, conv_w, conv_b, fc_w, fc_b)

    # Precise path: f32 MXU inputs + exact reciprocal.
    out_f32 = jax.block_until_ready(
        channel_attention_1d(x, conv_w, conv_b, fc_w, fc_b, fast_math=False))
    assert out_f32.shape == (bs, d_model, L)
    assert jnp.allclose(out_f32, ref, atol=1e-4, rtol=1e-4), "f32 path mismatch"

    # Fast path (default): bf16 MXU inputs, f32 accumulation/softmax, approx reciprocal.
    out_fast = jax.block_until_ready(
        channel_attention_1d(x, conv_w, conv_b, fc_w, fc_b, fast_math=True))
    assert out_fast.shape == (bs, d_model, L)
    assert jnp.allclose(out_fast, ref, atol=5e-2, rtol=5e-2), "bf16 path mismatch"

    print("KERNEL_OK")
</pallas_src>

<mosaic_0001>
module attributes {stable_mosaic.version = 11 : i64} {
  func.func @kernel(%arg0: i32, %arg1: memref<2x8x16xf32, #tpu.memory_space<vmem>>, %arg2: memref<3x8x8xf32, #tpu.memory_space<vmem>>, %arg3: memref<8x1xf32, #tpu.memory_space<vmem>>, %arg4: memref<16x16xf32, #tpu.memory_space<vmem>>, %arg5: memref<1x16xf32, #tpu.memory_space<vmem>>, %arg6: memref<2x8x16xf32, #tpu.memory_space<vmem>>, %arg7: memref<8x18xf32, #tpu.memory_space<vmem>>, %arg8: memref<2x8x16xf32, #tpu.memory_space<vmem>>) attributes {dimension_semantics = [#tpu.dimension_semantics<parallel>], iteration_bounds = array<i64: 2>, scalar_prefetch = 0 : i64, scratch_operands = 2 : i64, tpu.core_type = #tpu.core_type<tc>, window_params = [{transform_indices = @transform_0, window_bounds = array<i64: 2, 8, 16>}, {pipeline_mode = #tpu.pipeline_mode<synchronous>, transform_indices = @transform_1, window_bounds = array<i64: 3, 8, 8>}, {pipeline_mode = #tpu.pipeline_mode<synchronous>, transform_indices = @transform_2, window_bounds = array<i64: 8, 1>}, {pipeline_mode = #tpu.pipeline_mode<synchronous>, transform_indices = @transform_3, window_bounds = array<i64: 16, 16>}, {pipeline_mode = #tpu.pipeline_mode<synchronous>, transform_indices = @transform_4, window_bounds = array<i64: 1, 16>}, {transform_indices = @transform_5, window_bounds = array<i64: 2, 8, 16>}]} {
    %c0 = arith.constant 0 : index
    %c0_0 = arith.constant 0 : index
    %0 = vector.load %arg3[%c0, %c0_0] : memref<8x1xf32, #tpu.memory_space<vmem>>, vector<8x1xf32>
    %c0_1 = arith.constant 0 : index
    %c0_2 = arith.constant 0 : index
    %1 = vector.load %arg5[%c0_1, %c0_2] : memref<1x16xf32, #tpu.memory_space<vmem>>, vector<1x16xf32>
    %cst = arith.constant 0.000000e+00 : f32
    %2 = vector.broadcast %cst : f32 to vector<8x18xf32>
    %c0_3 = arith.constant 0 : index
    %c0_4 = arith.constant 0 : index
    %3 = vector.load %arg7[%c0_3, %c0_4] : memref<8x18xf32, #tpu.memory_space<vmem>>, vector<8x18xf32>
    tpu.vector_store %arg7[%c0_3, %c0_4], %2 {strides = array<i32>} : memref<8x18xf32, #tpu.memory_space<vmem>>, vector<8x18xf32>,
    %c0_i32 = arith.constant 0 : i32
    %c2_i32 = arith.constant 2 : i32
    %4 = arith.addi %c0_i32, %c2_i32 : i32
    %c1_i32 = arith.constant 1 : i32
    scf.for %arg9 = %c0_i32 to %4 step %c1_i32  : i32 {
      %c1_i32_15 = arith.constant 1 : i32
      %13 = arith.muli %arg9, %c1_i32_15 : i32
      %c0_i32_16 = arith.constant 0 : i32
      %14 = arith.addi %c0_i32_16, %13 : i32
      %15 = arith.index_cast %14 : i32 to index
      %c0_17 = arith.constant 0 : index
      %c0_18 = arith.constant 0 : index
      %16 = vector.load %arg1[%15, %c0_17, %c0_18] : memref<2x8x16xf32, #tpu.memory_space<vmem>>, vector<1x8x16xf32>
      %17 = vector.shape_cast %16 : vector<1x8x16xf32> to vector<8x16xf32>
      %c0_19 = arith.constant 0 : index
      %c1 = arith.constant 1 : index
      %18 = vector.load %arg7[%c0_19, %c1] : memref<8x18xf32, #tpu.memory_space<vmem>>, vector<8x16xf32>
      tpu.vector_store %arg7[%c0_19, %c1], %17 {strides = array<i32>} : memref<8x18xf32, #tpu.memory_space<vmem>>, vector<8x16xf32>,
      %cst_20 = arith.constant 0.000000e+00 : f32
      %19 = vector.broadcast %cst_20 : f32 to vector<8x16xf32>
      %c0_21 = arith.constant 0 : index
      %c0_22 = arith.constant 0 : index
      %c0_23 = arith.constant 0 : index
      %20 = vector.load %arg2[%c0_21, %c0_22, %c0_23] : memref<3x8x8xf32, #tpu.memory_space<vmem>>, vector<1x8x8xf32>
      %21 = vector.shape_cast %20 : vector<1x8x8xf32> to vector<8x8xf32>
      %c0_24 = arith.constant 0 : index
      %c0_25 = arith.constant 0 : index
      %22 = vector.load %arg7[%c0_24, %c0_25] : memref<8x18xf32, #tpu.memory_space<vmem>>, vector<8x16xf32>
      %cst_26 = arith.constant dense<0.000000e+00> : vector<8x16xf32>
      %23 = tpu.matmul %21, %22, %cst_26 {dimension_numbers = #tpu.dot_dimension_numbers<[1], [0], [0], [1], [0, 0, 1, 1], [], []>} : vector<8x8xf32>, vector<8x16xf32>, vector<8x16xf32> -> vector<8x16xf32>
      %24 = arith.addf %19, %23 : vector<8x16xf32>
      %c1_27 = arith.constant 1 : index
      %c0_28 = arith.constant 0 : index
      %c0_29 = arith.constant 0 : index
      %25 = vector.load %arg2[%c1_27, %c0_28, %c0_29] : memref<3x8x8xf32, #tpu.memory_space<vmem>>, vector<1x8x8xf32>
      %26 = vector.shape_cast %25 : vector<1x8x8xf32> to vector<8x8xf32>
      %c0_30 = arith.constant 0 : index
      %c1_31 = arith.constant 1 : index
      %27 = vector.load %arg7[%c0_30, %c1_31] : memref<8x18xf32, #tpu.memory_space<vmem>>, vector<8x16xf32>
      %cst_32 = arith.constant dense<0.000000e+00> : vector<8x16xf32>
      %28 = tpu.matmul %26, %27, %cst_32 {dimension_numbers = #tpu.dot_dimension_numbers<[1], [0], [0], [1], [0, 0, 1, 1], [], []>} : vector<8x8xf32>, vector<8x16xf32>, vector<8x16xf32> -> vector<8x16xf32>
      %29 = arith.addf %24, %28 : vector<8x16xf32>
      %c2 = arith.constant 2 : index
      %c0_33 = arith.constant 0 : index
      %c0_34 = arith.constant 0 : index
      %30 = vector.load %arg2[%c2, %c0_33, %c0_34] : memref<3x8x8xf32, #tpu.memory_space<vmem>>, vector<1x8x8xf32>
      %31 = vector.shape_cast %30 : vector<1x8x8xf32> to vector<8x8xf32>
      %c0_35 = arith.constant 0 : index
      %c2_36 = arith.constant 2 : index
      %32 = vector.load %arg7[%c0_35, %c2_36] : memref<8x18xf32, #tpu.memory_space<vmem>>, vector<8x16xf32>
      %cst_37 = arith.constant dense<0.000000e+00> : vector<8x16xf32>
      %33 = tpu.matmul %31, %32, %cst_37 {dimension_numbers = #tpu.dot_dimension_numbers<[1], [0], [0], [1], [0, 0, 1, 1], [], []>} : vector<8x8xf32>, vector<8x16xf32>, vector<8x16xf32> -> vector<8x16xf32>
      %34 = arith.addf %29, %33 : vector<8x16xf32>
      %35 = vector.broadcast %0 : vector<8x1xf32> to vector<8x16xf32>
      %36 = arith.addf %34, %35 : vector<8x16xf32>
      %cst_38 = arith.constant dense<0.000000e+00> : vector<8x8xf32>
      %37 = tpu.matmul %36, %36, %cst_38 {dimension_numbers = #tpu.dot_dimension_numbers<[1], [1], [0], [0], [0, 0, 1, 0], [], []>} : vector<8x16xf32>, vector<8x16xf32>, vector<8x8xf32> -> vector<8x8xf32>
      %cst_39 = arith.constant 2.500000e-01 : f32
      %38 = vector.broadcast %cst_39 : f32 to vector<8x8xf32>
      %39 = arith.mulf %37, %38 : vector<8x8xf32>
      %cst_40 = arith.constant dense<0xFF800000> : vector<8xf32>
      %40 = vector.multi_reduction <maximumf>, %39, %cst_40 [1] : vector<8x8xf32> to vector<8xf32>
      %41 = vector.shape_cast %40 : vector<8xf32> to vector<8x1xf32>
      %42 = vector.broadcast %41 : vector<8x1xf32> to vector<8x8xf32>
      %43 = arith.subf %39, %42 : vector<8x8xf32>
      %44 = math.exp %43 : vector<8x8xf32>
      %cst_41 = arith.constant dense<0.000000e+00> : vector<8xf32>
      %45 = vector.multi_reduction <add>, %44, %cst_41 [1] : vector<8x8xf32> to vector<8xf32>
      %46 = vector.shape_cast %45 : vector<8xf32> to vector<8x1xf32>
      %47 = tpu.reciprocal %46 : vector<8x1xf32> -> vector<8x1xf32>
      %48 = vector.broadcast %47 : vector<8x1xf32> to vector<8x8xf32>
      %49 = arith.mulf %44, %48 : vector<8x8xf32>
      %cst_42 = arith.constant dense<0.000000e+00> : vector<8x16xf32>
      %50 = tpu.matmul %49, %36, %cst_42 {dimension_numbers = #tpu.dot_dimension_numbers<[1], [0], [0], [1], [0, 0, 1, 1], [], []>} : vector<8x8xf32>, vector<8x16xf32>, vector<8x16xf32> -> vector<8x16xf32>
      %51 = arith.index_cast %14 : i32 to index
      %c0_43 = arith.constant 0 : index
      %c0_44 = arith.constant 0 : index
      %52 = vector.load %arg8[%51, %c0_43, %c0_44] : memref<2x8x16xf32, #tpu.memory_space<vmem>>, vector<1x8x16xf32>
      %53 = vector.shape_cast %52 : vector<1x8x16xf32> to vector<8x16xf32>
      %54 = vector.shape_cast %50 : vector<8x16xf32> to vector<1x8x16xf32>
      tpu.vector_store %arg8[%51, %c0_43, %c0_44], %54 {strides = array<i32>} : memref<2x8x16xf32, #tpu.memory_space<vmem>>, vector<1x8x16xf32>,
    }
    %c2_i32_5 = arith.constant 2 : i32
    %c0_6 = arith.constant 0 : index
    %c0_7 = arith.constant 0 : index
    %c0_8 = arith.constant 0 : index
    %5 = vector.load %arg8[%c0_6, %c0_7, %c0_8] : memref<2x8x16xf32, #tpu.memory_space<vmem>>, vector<2x8x16xf32>
    %6 = vector.shape_cast %5 : vector<2x8x16xf32> to vector<16x16xf32>
    %c0_9 = arith.constant 0 : index
    %c0_10 = arith.constant 0 : index
    %7 = vector.load %arg4[%c0_9, %c0_10] : memref<16x16xf32, #tpu.memory_space<vmem>>, vector<16x16xf32>
    %cst_11 = arith.constant dense<0.000000e+00> : vector<16x16xf32>
    %8 = tpu.matmul %6, %7, %cst_11 {dimension_numbers = #tpu.dot_dimension_numbers<[1], [0], [0], [1], [0, 0, 1, 1], [], []>} : vector<16x16xf32>, vector<16x16xf32>, vector<16x16xf32> -> vector<16x16xf32>
    %9 = vector.broadcast %1 : vector<1x16xf32> to vector<16x16xf32>
    %10 = arith.addf %8, %9 : vector<16x16xf32>
    %11 = vector.shape_cast %10 : vector<16x16xf32> to vector<2x8x16xf32>
    %c0_12 = arith.constant 0 : index
    %c0_13 = arith.constant 0 : index
    %c0_14 = arith.constant 0 : index
    %12 = vector.load %arg6[%c0_12, %c0_13, %c0_14] : memref<2x8x16xf32, #tpu.memory_space<vmem>>, vector<2x8x16xf32>
    tpu.vector_store %arg6[%c0_12, %c0_13, %c0_14], %11 {strides = array<i32>} : memref<2x8x16xf32, #tpu.memory_space<vmem>>, vector<2x8x16xf32>,
    return
  }
  func.func @transform_0(%arg0: i32) -> (i32, i32, i32) {
    %c0_i32 = arith.constant 0 : i32
    %c0_i32_0 = arith.constant 0 : i32
    %c0_i32_1 = arith.constant 0 : i32
    return %arg0, %c0_i32, %c0_i32_0 : i32, i32, i32
  }
  func.func @transform_1(%arg0: i32) -> (i32, i32, i32) {
    %c0_i32 = arith.constant 0 : i32
    %c0_i32_0 = arith.constant 0 : i32
    %c0_i32_1 = arith.constant 0 : i32
    %c0_i32_2 = arith.constant 0 : i32
    return %c0_i32, %c0_i32_0, %c0_i32_1 : i32, i32, i32
  }
  func.func @transform_2(%arg0: i32) -> (i32, i32) {
    %c0_i32 = arith.constant 0 : i32
    %c0_i32_0 = arith.constant 0 : i32
    %c0_i32_1 = arith.constant 0 : i32
    return %c0_i32, %c0_i32_0 : i32, i32
  }
  func.func @transform_3(%arg0: i32) -> (i32, i32) {
    %c0_i32 = arith.constant 0 : i32
    %c0_i32_0 = arith.constant 0 : i32
    %c0_i32_1 = arith.constant 0 : i32
    return %c0_i32, %c0_i32_0 : i32, i32
  }
  func.func @transform_4(%arg0: i32) -> (i32, i32) {
    %c0_i32 = arith.constant 0 : i32
    %c0_i32_0 = arith.constant 0 : i32
    %c0_i32_1 = arith.constant 0 : i32
    return %c0_i32, %c0_i32_0 : i32, i32
  }
  func.func @transform_5(%arg0: i32) -> (i32, i32, i32) {
    %c0_i32 = arith.constant 0 : i32
    %c0_i32_0 = arith.constant 0 : i32
    %c0_i32_1 = arith.constant 0 : i32
    return %arg0, %c0_i32, %c0_i32_0 : i32, i32, i32
  }
}

</mosaic_0001>

<llo_original>
// kernel: channel_attention_1d.1
$region0: #{channel_attention_1d.1}
  #allocation0 [shape = 'u32[]', space=smem, size = 0x4, offset = 0x4, fixed_abs, tag = 'smem constant byte address 0x4 - core index']
  #allocation1 [shape = 'u32[144,128]{1,0:T(1,128)}', space=vmem, size = 0x12000, scoped, tag = 'internal scratch']
  #allocation2 [shape = 'f32[8,18]{1,0:T(8,128)}', space=vmem, size = 0x1000, scoped, tag = 'scratch operand']
  #allocation3 [shape = 'f32[2,8,16]{2,1,0:T(8,128)}', space=vmem, size = 0x2000, scoped, tag = 'scratch operand']
  %s0 = inlined_call_operand.vmem [shape: f32[4,8,16], index: 0, kind: input, shape index: {}]
  %s1 = inlined_call_operand.vmem [shape: f32[3,8,8], index: 1, kind: input, shape index: {}]
  %s2 = inlined_call_operand.vmem [shape: f32[8,1], index: 2, kind: input, shape index: {}]
  %s3 = inlined_call_operand.vmem [shape: f32[16,16], index: 3, kind: input, shape index: {}]
  %s4 = inlined_call_operand.vmem [shape: f32[1,16], index: 4, kind: input, shape index: {}]
  %s5 = inlined_call_operand.hbm [shape: f32[4,8,16], index: 5, kind: output, shape index: {}]
  %s6 = sld [smem:[#allocation0]]
  $region60: #{channel_attention_1d.1} parent=0
    _
  %s8 = ssub.s32 1, %s6
  %s9 = scalar_select 0, %s8, %s6
  $region1: #{channel_attention_1d.1} parent=0
    #allocation4 [shape = 'u8[16384]{0}', space=vmem, size = 0x4000, scoped, tag = 'output window, operand 0']
    #allocation5 [shape = 's32[2]{0}', space=sflag, size = 0x8, scoped, tag = 'scoped memory for channel_attention_1d.1']
    %10 = vsyncpa [#allocation5], 0
    %s11 = scalar_lea.sflag [#allocation5], 1
    %12 = vsyncpa %s11, 0
    loop: start=0, step=1, limit=4
    $region2: #{channel_attention_1d.1} parent=1 // loop_pre_header
      _
    $region3: #{channel_attention_1d.1} parent=1 // loop_header
      %s14 = sphi 0, %s18
      %p15 = scmp.ge.s32.totalorder %s14, 4
      %s24 = sphi 0, %s26
      %s27 = sphi 0, %s24
      %s28 = sphi 0, %s27
      %s44 = sphi 0, %s28
      %s48 = sphi 0, %s48
      %s50 = sphi 0, %s48
      %s51 = sphi 0, %s50
      %s65 = sphi 0, %s51
      %s69 = sphi 0, %s69
      %s71 = sphi 0, %s69
      %s72 = sphi 0, %s71
      %s86 = sphi 0, %s72
      %s90 = sphi 0, %s90
      %s92 = sphi 0, %s90
      %s93 = sphi 0, %s92
      %s107 = sphi 0, %s93
      %s111 = sphi 0, %s111
      %s113 = sphi 0, %s111
      %s114 = sphi 0, %s113
      %s128 = sphi 0, %s114
      %s134 = sphi 0, %s136
      %s137 = sphi 0, %s134
      %s138 = sphi 0, %s137
      %s154 = sphi 0, %s138
    $region4: #{channel_attention_1d.1} parent=1 // loop_header_branch
      %17 = sbr.rel (%p15) target = $region8
    $region5: #{channel_attention_1d.1} parent=1 // loop_body
      %s19 = ssub.s32 %s14, 1
      %s20 = ssub.s32 %s14, 2
      %s21 = sadd.s32 %s14, 1
      %s22 = ssub.s32 %s14, %s21
      %p23 = scmp.eq.s32.totalorder %s22, 0
      %s25 = sadd.s32 %s24, 1
      %s26 = scalar_select %p23, %s24, %s25
      %p29 = pneg %p23
      %p30 = scmp.eq.s32.totalorder %s14, 1
      %p31 = por %p29, %p30
      %p32 = scmp.ne.s32.totalorder %s24, %s27
      %p33 = scmp.eq.s32.totalorder %s14, 0
      %p34 = por %p32, %p33
      %p35 = scmp.ne.s32.totalorder %s24, %s27
      %p36 = scmp.eq.s32.totalorder %s19, 1
      %p37 = por %p35, %p36
      %p38 = scmp.ne.s32.totalorder %s27, %s28
      %p39 = scmp.eq.s32.totalorder %s19, 0
      %p40 = por %p38, %p39
      %p41 = scmp.ne.s32.totalorder %s27, %s28
      %p42 = scmp.eq.s32.totalorder %s20, 1
      %p43 = por %p41, %p42
      %p45 = scmp.ne.s32.totalorder %s28, %s44
      %p46 = scmp.eq.s32.totalorder %s20, 0
      %p47 = por %p45, %p46
      %s49 = sadd.s32 %s48, 1
      %p52 = scmp.eq.s32.totalorder %s14, 1
      %p53 = scmp.ne.s32.totalorder %s48, %s50
      %p54 = scmp.eq.s32.totalorder %s14, 0
      %p55 = por %p53, %p54
      %p56 = scmp.ne.s32.totalorder %s48, %s50
      %p57 = scmp.eq.s32.totalorder %s19, 1
      %p58 = por %p56, %p57
      %p59 = scmp.ne.s32.totalorder %s50, %s51
      %p60 = scmp.eq.s32.totalorder %s19, 0
      %p61 = por %p59, %p60
      %p62 = scmp.ne.s32.totalorder %s50, %s51
      %p63 = scmp.eq.s32.totalorder %s20, 1
      %p64 = por %p62, %p63
      %p66 = scmp.ne.s32.totalorder %s51, %s65
      %p67 = scmp.eq.s32.totalorder %s20, 0
      %p68 = por %p66, %p67
      %s70 = sadd.s32 %s69, 1
      %p73 = scmp.eq.s32.totalorder %s14, 1
      %p74 = scmp.ne.s32.totalorder %s69, %s71
      %p75 = scmp.eq.s32.totalorder %s14, 0
      %p76 = por %p74, %p75
      %p77 = scmp.ne.s32.totalorder %s69, %s71
      %p78 = scmp.eq.s32.totalorder %s19, 1
      %p79 = por %p77, %p78
      %p80 = scmp.ne.s32.totalorder %s71, %s72
      %p81 = scmp.eq.s32.totalorder %s19, 0
      %p82 = por %p80, %p81
      %p83 = scmp.ne.s32.totalorder %s71, %s72
      %p84 = scmp.eq.s32.totalorder %s20, 1
      %p85 = por %p83, %p84
      %p87 = scmp.ne.s32.totalorder %s72, %s86
      %p88 = scmp.eq.s32.totalorder %s20, 0
      %p89 = por %p87, %p88
      %s91 = sadd.s32 %s90, 1
      %p94 = scmp.eq.s32.totalorder %s14, 1
      %p95 = scmp.ne.s32.totalorder %s90, %s92
      %p96 = scmp.eq.s32.totalorder %s14, 0
      %p97 = por %p95, %p96
      %p98 = scmp.ne.s32.totalorder %s90, %s92
      %p99 = scmp.eq.s32.totalorder %s19, 1
      %p100 = por %p98, %p99
      %p101 = scmp.ne.s32.totalorder %s92, %s93
      %p102 = scmp.eq.s32.totalorder %s19, 0
      %p103 = por %p101, %p102
      %p104 = scmp.ne.s32.totalorder %s92, %s93
      %p105 = scmp.eq.s32.totalorder %s20, 1
      %p106 = por %p104, %p105
      %p108 = scmp.ne.s32.totalorder %s93, %s107
      %p109 = scmp.eq.s32.totalorder %s20, 0
      %p110 = por %p108, %p109
      %s112 = sadd.s32 %s111, 1
      %p115 = scmp.eq.s32.totalorder %s14, 1
      %p116 = scmp.ne.s32.totalorder %s111, %s113
      %p117 = scmp.eq.s32.totalorder %s14, 0
      %p118 = por %p116, %p117
      %p119 = scmp.ne.s32.totalorder %s111, %s113
      %p120 = scmp.eq.s32.totalorder %s19, 1
      %p121 = por %p119, %p120
      %p122 = scmp.ne.s32.totalorder %s113, %s114
      %p123 = scmp.eq.s32.totalorder %s19, 0
      %p124 = por %p122, %p123
      %p125 = scmp.ne.s32.totalorder %s113, %s114
      %p126 = scmp.eq.s32.totalorder %s20, 1
      %p127 = por %p125, %p126
      %p129 = scmp.ne.s32.totalorder %s114, %s128
      %p130 = scmp.eq.s32.totalorder %s20, 0
      %p131 = por %p129, %p130
      %s132 = ssub.s32 %s14, %s21
      %p133 = scmp.eq.s32.totalorder %s132, 0
      %s135 = sadd.s32 %s134, 1
      %s136 = scalar_select %p133, %s134, %s135
      %p139 = pneg %p133
      %p140 = scmp.eq.s32.totalorder %s14, 1
      %p141 = por %p139, %p140
      %p142 = scmp.ne.s32.totalorder %s134, %s137
      %p143 = scmp.eq.s32.totalorder %s14, 0
      %p144 = por %p142, %p143
      %p145 = scmp.ne.s32.totalorder %s134, %s137
      %p146 = scmp.eq.s32.totalorder %s19, 1
      %p147 = por %p145, %p146
      %p148 = scmp.ne.s32.totalorder %s137, %s138
      %p149 = scmp.eq.s32.totalorder %s19, 0
      %p150 = por %p148, %p149
      %p151 = scmp.ne.s32.totalorder %s137, %s138
      %p152 = scmp.eq.s32.totalorder %s20, 1
      %p153 = por %p151, %p152
      %p155 = scmp.ne.s32.totalorder %s138, %s154
      %p156 = scmp.eq.s32.totalorder %s20, 0
      %p157 = por %p155, %p156
      %p158 = scmp.le.s32.totalorder 1, %s14
      %p159 = scmp.lt.s32.totalorder %s14, 3
      %p160 = pnand %p158, %p159
      %p161 = pneg %p160
      // Predicated region
      $region9: #{channel_attention_1d.1} parent=5 // pred_check
        _
      $region10: #{channel_attention_1d.1} parent=5 // pred_check_branch
        %163 = sbr.rel (%p160) target = $region12
      $region11: #{channel_attention_1d.1} parent=5 // pred_region
        %s164 = ssub.s32 %s14, 1
        // Predicated region
        $region13: #{channel_attention_1d.1} parent=11 // pred_check
          %p165 = pneg %p61
        $region14: #{channel_attention_1d.1} parent=11 // pred_check_branch
          %167 = sbr.rel (%p165) target = $region16
        $region15: #{channel_attention_1d.1} parent=11 // pred_region
          _
        $region16: #{channel_attention_1d.1} parent=11 // pred_fallthru
          _
        // Predicated region
        $region17: #{channel_attention_1d.1} parent=11 // pred_check
          %p168 = pneg %p82
        $region18: #{channel_attention_1d.1} parent=11 // pred_check_branch
          %170 = sbr.rel (%p168) target = $region20
        $region19: #{channel_attention_1d.1} parent=11 // pred_region
          _
        $region20: #{channel_attention_1d.1} parent=11 // pred_fallthru
          _
        // Predicated region
        $region21: #{channel_attention_1d.1} parent=11 // pred_check
          %p171 = pneg %p103
        $region22: #{channel_attention_1d.1} parent=11 // pred_check_branch
          %173 = sbr.rel (%p171) target = $region24
        $region23: #{channel_attention_1d.1} parent=11 // pred_region
          _
        $region24: #{channel_attention_1d.1} parent=11 // pred_fallthru
          _
        // Predicated region
        $region25: #{channel_attention_1d.1} parent=11 // pred_check
          %p174 = pneg %p124
        $region26: #{channel_attention_1d.1} parent=11 // pred_check_branch
          %176 = sbr.rel (%p174) target = $region28
        $region27: #{channel_attention_1d.1} parent=11 // pred_region
          _
        $region28: #{channel_attention_1d.1} parent=11 // pred_fallthru
          _
      $region12: #{channel_attention_1d.1} parent=5 // pred_fallthru
        _
      %p177 = scmp.lt.s32.totalorder %s14, 2
      // Predicated region
      $region29: #{channel_attention_1d.1} parent=5 // pred_check
        %p178 = pneg %p177
      $region30: #{channel_attention_1d.1} parent=5 // pred_check_branch
        %180 = sbr.rel (%p178) target = $region32
      $region31: #{channel_attention_1d.1} parent=5 // pred_region
        // Predicated region
        $region33: #{channel_attention_1d.1} parent=31 // pred_check
          %p181 = pneg %p34
        $region34: #{channel_attention_1d.1} parent=31 // pred_check_branch
          %183 = sbr.rel (%p181) target = $region36
        $region35: #{channel_attention_1d.1} parent=31 // pred_region
          %s184 = smul.u32 2, %s14
          %p185 = scmp.lt.s32.totalorder %s184, 3
          %s186 = scalar_select %p185, %s184, 3
          %s187 = smul.addr %s186, 8
          %s188 = scalar_lea.vmem %s0, %s187
          %s189 = smul.u32 2, %s14
        $region36: #{channel_attention_1d.1} parent=31 // pred_fallthru
          _
      $region32: #{channel_attention_1d.1} parent=5 // pred_fallthru
        _
      %p190 = scmp.le.s32.totalorder 1, %s14
      %p191 = scmp.lt.s32.totalorder %s14, 3
      %p192 = pnand %p190, %p191
      %p193 = pneg %p192
      // Predicated region
      $region37: #{channel_attention_1d.1} parent=5 // pred_check
        _
      $region38: #{channel_attention_1d.1} parent=5 // pred_check_branch
        %195 = sbr.rel (%p192) target = $region40
      $region39: #{channel_attention_1d.1} parent=5 // pred_region
        %s196 = ssub.s32 %s14, 1
        %s197 = smul.u32 2, %s19
        %p198 = scmp.lt.s32.totalorder %s197, 3
        %s199 = scalar_select %p198, %s197, 3
        %s200 = smul.addr %s199, 8
        %s201 = scalar_lea.vmem %s0, %s200
        %p202 = pneg %p40
        %p203 = pneg %p37
        %p204 = pneg %p61
        %p205 = pneg %p58
        %p206 = pneg %p82
        %p207 = pneg %p79
        %p208 = pneg %p103
        %p209 = pneg %p100
        %p210 = pneg %p124
        %p211 = pneg %p121
        %p212 = pneg %p150
        %p213 = pneg %p147
        %s214 = sand.u32 %s137, 1
        %s215 = scalar_lea.sflag [#allocation5], %s214
        %s216 = sand.u32 %s137, 1
        %s217 = smul.addr %s216, 16
        %s218 = scalar_lea.vmem [#allocation4], %s217
        %s219 = smul.u32 2, %s19
        %p220 = scmp.lt.s32.totalorder %s219, 3
        %s221 = scalar_select %p220, %s219, 3
        %s222 = smul.addr %s221, 8
        %s223 = scalar_lea.vmem %s0, %s222
        %s224 = smul.u32 2, %s19
        %s225 = smul.u32 2, %s19
        %v226 = vld [vmem:[%s2] sm:$0xff]
        %v227 = vld [vmem:[%s4] sm:$0x1]
        %vm228 = vcmask 146432
        %229 = vst.msk [vmem:[#allocation2] sm:$0xff] %vm228, 0.0
        loop: start=0, step=1, limit=2
        $region41: #{channel_attention_1d.1} parent=39 // loop_pre_header
          _
        $region42: #{channel_attention_1d.1} parent=39 // loop_header
          %s231 = sphi 0, %s235
          %p232 = scmp.ge.s32.totalorder %s231, 2
        $region43: #{channel_attention_1d.1} parent=39 // loop_header_branch
          %234 = sbr.rel (%p232) target = $region47
        $region44: #{channel_attention_1d.1} parent=39 // loop_body
          %s236 = smul.u32 %s231, 8
          %s237 = scalar_lea.vmem %s223, %s236
          %v238 = vld [vmem:[%s237] sm:$0xff]
          %240 = vrot.lane.b32.xlu0 %v238, 1
          %v241 = vpop.permute.xlu0 %240
          %vm243 = vcmask 138248
          %244 = vst.msk [vmem:[#allocation2] sm:$0xff] %vm243, %v241
          %v245 = vld [vmem:[%s1] sm:$0xff]
          %v246 = vld [vmem:[#allocation2] sm:$0xff]
          %s247 = scalar_lea.vmem %s1, 8
          %v248 = vld [vmem:[%s247] sm:$0xff]
          %250 = vrot.lane.b32.xlu0 %v246, 127
          %v251 = vpop.permute.xlu0 %250
          %vm253 = vcmask 64512
          %v255 = vsel %vm253, %v248, 0
          %257 = vmatprep.subr.mxu0 0.0
          %258 = vmatpush1.msra.mxu0 %v251
          %259 = vmatprep.subr.mxu0 0.0
          %260 = vmatpush1.msra.mxu0 0.0
          %261 = vmatprep.subr.mxu0 0.0
          %262 = vmatpush1.msra.mxu0 0.0
          %263 = vmatprep.subr.mxu0 0.0
          %264 = vmatpush1.msra.mxu0 0.0
          %265 = vmatprep.subr.mxu0 0.0
          %266 = vmatpush1.msra.mxu0 0.0
          %267 = vmatprep.subr.mxu0 0.0
          %268 = vmatpush1.msra.mxu0 0.0
          %269 = vmatprep.subr.mxu0 0.0
          %270 = vmatpush1.msra.mxu0 0.0
          %271 = vmatprep.subr.mxu0 0.0
          %272 = vmatpush1.msra.mxu0 0.0
          %273 = vmatprep.subr.mxu0 0.0
          %274 = vmatpush1.msra.mxu0 0.0
          %275 = vmatprep.subr.mxu0 0.0
          %276 = vmatpush1.msra.mxu0 0.0
          %277 = vmatprep.subr.mxu0 0.0
          %278 = vmatpush1.msra.mxu0 0.0
          %279 = vmatprep.subr.mxu0 0.0
          %280 = vmatpush1.msra.mxu0 0.0
          %281 = vmatprep.subr.mxu0 0.0
          %282 = vmatpush1.msra.mxu0 0.0
          %283 = vmatprep.subr.mxu0 0.0
          %284 = vmatpush1.msra.mxu0 0.0
          %285 = vmatprep.subr.mxu0 0.0
          %286 = vmatpush1.msra.mxu0 0.0
          %287 = vmatprep.subr.mxu0 0.0
          %288 = vmatpush1.msra.mxu0 0.0
          %289 = vmatprep.subr.mxu0 0.0
          %290 = vmatpush1.msra.mxu0 0.0
          %291 = vmatprep.subr.mxu0 0.0
          %292 = vmatpush1.msra.mxu0 0.0
          %293 = vmatprep.subr.mxu0 0.0
          %294 = vmatpush1.msra.mxu0 0.0
          %295 = vmatprep.subr.mxu0 0.0
          %296 = vmatpush1.msra.mxu0 0.0
          %297 = vmatprep.subr.mxu0 0.0
          %298 = vmatpush1.msra.mxu0 0.0
          %299 = vmatprep.subr.mxu0 0.0
          %300 = vmatpush1.msra.mxu0 0.0
          %301 = vmatprep.subr.mxu0 0.0
          %302 = vmatpush1.msra.mxu0 0.0
          %303 = vmatprep.subr.mxu0 0.0
          %304 = vmatpush1.msra.mxu0 0.0
          %305 = vmatprep.subr.mxu0 0.0
          %306 = vmatpush1.msra.mxu0 0.0
          %307 = vmatprep.subr.mxu0 0.0
          %308 = vmatpush1.msra.mxu0 0.0
          %309 = vmatprep.subr.mxu0 0.0
          %310 = vmatpush1.msra.mxu0 0.0
          %311 = vmatprep.subr.mxu0 0.0
          %312 = vmatpush1.msra.mxu0 0.0
          %313 = vmatprep.subr.mxu0 0.0
          %314 = vmatpush1.msra.mxu0 0.0
          %315 = vmatprep.subr.mxu0 0.0
          %316 = vmatpush1.msra.mxu0 0.0
          %317 = vmatprep.subr.mxu0 0.0
          %318 = vmatpush1.msra.mxu0 0.0
          %319 = vmatprep.subr.mxu0 0.0
          %320 = vmatpush1.msra.mxu0 0.0
          %321 = vmatprep.mubr.f32.mxu0 0.0
          %322 = vmatmul.mubr.f32.gmra.mrb[0].mxu0 %v255
          %v323 = vpop.f32.mrb[0].mxu0
          %v324 = vadd.f32 0.0, %v323
          %v325 = vpop.f32.mrb[0].mxu0
          %326 = vdwg.mxu0
          %v328 = vsel %vm253, %v245, 0
          %330 = vmatprep.subr.mxu0 0.0
          %331 = vmatpush1.msra.mxu0 %v246
          %332 = vmatprep.subr.mxu0 0.0
          %333 = vmatpush1.msra.mxu0 0.0
          %334 = vmatprep.subr.mxu0 0.0
          %335 = vmatpush1.msra.mxu0 0.0
          %336 = vmatprep.subr.mxu0 0.0
          %337 = vmatpush1.msra.mxu0 0.0
          %338 = vmatprep.subr.mxu0 0.0
          %339 = vmatpush1.msra.mxu0 0.0
          %340 = vmatprep.subr.mxu0 0.0
          %341 = vmatpush1.msra.mxu0 0.0
          %342 = vmatprep.subr.mxu0 0.0
          %343 = vmatpush1.msra.mxu0 0.0
          %344 = vmatprep.subr.mxu0 0.0
          %345 = vmatpush1.msra.mxu0 0.0
          %346 = vmatprep.subr.mxu0 0.0
          %347 = vmatpush1.msra.mxu0 0.0
          %348 = vmatprep.subr.mxu0 0.0
          %349 = vmatpush1.msra.mxu0 0.0
          %350 = vmatprep.subr.mxu0 0.0
          %351 = vmatpush1.msra.mxu0 0.0
          %352 = vmatprep.subr.mxu0 0.0
          %353 = vmatpush1.msra.mxu0 0.0
          %354 = vmatprep.subr.mxu0 0.0
          %355 = vmatpush1.msra.mxu0 0.0
          %356 = vmatprep.subr.mxu0 0.0
          %357 = vmatpush1.msra.mxu0 0.0
          %358 = vmatprep.subr.mxu0 0.0
          %359 = vmatpush1.msra.mxu0 0.0
          %360 = vmatprep.subr.mxu0 0.0
          %361 = vmatpush1.msra.mxu0 0.0
          %362 = vmatprep.subr.mxu0 0.0
          %363 = vmatpush1.msra.mxu0 0.0
          %364 = vmatprep.subr.mxu0 0.0
          %365 = vmatpush1.msra.mxu0 0.0
          %366 = vmatprep.subr.mxu0 0.0
          %367 = vmatpush1.msra.mxu0 0.0
          %368 = vmatprep.subr.mxu0 0.0
          %369 = vmatpush1.msra.mxu0 0.0
          %370 = vmatprep.subr.mxu0 0.0
          %371 = vmatpush1.msra.mxu0 0.0
          %372 = vmatprep.subr.mxu0 0.0
          %373 = vmatpush1.msra.mxu0 0.0
          %374 = vmatprep.subr.mxu0 0.0
          %375 = vmatpush1.msra.mxu0 0.0
          %376 = vmatprep.subr.mxu0 0.0
          %377 = vmatpush1.msra.mxu0 0.0
          %378 = vmatprep.subr.mxu0 0.0
          %379 = vmatpush1.msra.mxu0 0.0
          %380 = vmatprep.subr.mxu0 0.0
          %381 = vmatpush1.msra.mxu0 0.0
          %382 = vmatprep.subr.mxu0 0.0
          %383 = vmatpush1.msra.mxu0 0.0
          %384 = vmatprep.subr.mxu0 0.0
          %385 = vmatpush1.msra.mxu0 0.0
          %386 = vmatprep.subr.mxu0 0.0
          %387 = vmatpush1.msra.mxu0 0.0
          %388 = vmatprep.subr.mxu0 0.0
          %389 = vmatpush1.msra.mxu0 0.0
          %390 = vmatprep.subr.mxu0 0.0
          %391 = vmatpush1.msra.mxu0 0.0
          %392 = vmatprep.subr.mxu0 0.0
          %393 = vmatpush1.msra.mxu0 0.0
          %394 = vmatprep.mubr.f32.mxu0 0.0
          %395 = vmatmul.mubr.f32.gmra.mrb[0].mxu0 %v328
          %v396 = vpop.f32.mrb[0].mxu0
          %v397 = vadd.f32 %v324, %v396
          %v398 = vpop.f32.mrb[0].mxu0
          %399 = vdwg.mxu0
          %s400 = scalar_lea.vmem %s1, 16
          %v401 = vld [vmem:[%s400] sm:$0xff]
          %402 = vrot.lane.b32.xlu0 %v246, 126
          %v403 = vpop.permute.xlu0 %402
          %v406 = vsel %vm253, %v401, 0
          %408 = vmatprep.subr.mxu0 0.0
          %409 = vmatpush1.msra.mxu0 %v403
          %410 = vmatprep.subr.mxu0 0.0
          %411 = vmatpush1.msra.mxu0 0.0
          %412 = vmatprep.subr.mxu0 0.0
          %413 = vmatpush1.msra.mxu0 0.0
          %414 = vmatprep.subr.mxu0 0.0
          %415 = vmatpush1.msra.mxu0 0.0
          %416 = vmatprep.subr.mxu0 0.0
          %417 = vmatpush1.msra.mxu0 0.0
          %418 = vmatprep.subr.mxu0 0.0
          %419 = vmatpush1.msra.mxu0 0.0
          %420 = vmatprep.subr.mxu0 0.0
          %421 = vmatpush1.msra.mxu0 0.0
          %422 = vmatprep.subr.mxu0 0.0
          %423 = vmatpush1.msra.mxu0 0.0
          %424 = vmatprep.subr.mxu0 0.0
          %425 = vmatpush1.msra.mxu0 0.0
          %426 = vmatprep.subr.mxu0 0.0
          %427 = vmatpush1.msra.mxu0 0.0
          %428 = vmatprep.subr.mxu0 0.0
          %429 = vmatpush1.msra.mxu0 0.0
          %430 = vmatprep.subr.mxu0 0.0
          %431 = vmatpush1.msra.mxu0 0.0
          %432 = vmatprep.subr.mxu0 0.0
          %433 = vmatpush1.msra.mxu0 0.0
          %434 = vmatprep.subr.mxu0 0.0
          %435 = vmatpush1.msra.mxu0 0.0
          %436 = vmatprep.subr.mxu0 0.0
          %437 = vmatpush1.msra.mxu0 0.0
          %438 = vmatprep.subr.mxu0 0.0
          %439 = vmatpush1.msra.mxu0 0.0
          %440 = vmatprep.subr.mxu0 0.0
          %441 = vmatpush1.msra.mxu0 0.0
          %442 = vmatprep.subr.mxu0 0.0
          %443 = vmatpush1.msra.mxu0 0.0
          %444 = vmatprep.subr.mxu0 0.0
          %445 = vmatpush1.msra.mxu0 0.0
          %446 = vmatprep.subr.mxu0 0.0
          %447 = vmatpush1.msra.mxu0 0.0
          %448 = vmatprep.subr.mxu0 0.0
          %449 = vmatpush1.msra.mxu0 0.0
          %450 = vmatprep.subr.mxu0 0.0
          %451 = vmatpush1.msra.mxu0 0.0
          %452 = vmatprep.subr.mxu0 0.0
          %453 = vmatpush1.msra.mxu0 0.0
          %454 = vmatprep.subr.mxu0 0.0
          %455 = vmatpush1.msra.mxu0 0.0
          %456 = vmatprep.subr.mxu0 0.0
          %457 = vmatpush1.msra.mxu0 0.0
          %458 = vmatprep.subr.mxu0 0.0
          %459 = vmatpush1.msra.mxu0 0.0
          %460 = vmatprep.subr.mxu0 0.0
          %461 = vmatpush1.msra.mxu0 0.0
          %462 = vmatprep.subr.mxu0 0.0
          %463 = vmatpush1.msra.mxu0 0.0
          %464 = vmatprep.subr.mxu0 0.0
          %465 = vmatpush1.msra.mxu0 0.0
          %466 = vmatprep.subr.mxu0 0.0
          %467 = vmatpush1.msra.mxu0 0.0
          %468 = vmatprep.subr.mxu0 0.0
          %469 = vmatpush1.msra.mxu0 0.0
          %470 = vmatprep.subr.mxu0 0.0
          %471 = vmatpush1.msra.mxu0 0.0
          %472 = vmatprep.mubr.f32.mxu0 0.0
          %473 = vmatmul.mubr.f32.gmra.mrb[0].mxu0 %v406
          %v474 = vpop.f32.mrb[0].mxu0
          %v475 = vadd.f32 0.0, %v474
          %v476 = vpop.f32.mrb[0].mxu0
          %477 = vdwg.mxu0
          %v478 = vadd.f32 %v397, %v475
          %480 = vset.pattern.permute.xlu0 0
          %481 = vperm.xlu0 %480, %v226
          %v482 = vpop.permute.xlu0 %481
          %v484 = vadd.f32 %v478, %v482
          %vm485 = vcmask 130048
          %v487 = vsel %vm485, %v484, 0
          %489 = vmatprep.subr.mxu0 0.0
          %490 = vmatpush1.xpose.msra.mxu0 %v487
          %491 = vmatprep.subr.mxu0 0.0
          %492 = vmatpush1.xpose.msra.mxu0 0.0
          %493 = vmatprep.subr.mxu0 0.0
          %494 = vmatpush1.xpose.msra.mxu0 0.0
          %495 = vmatprep.subr.mxu0 0.0
          %496 = vmatpush1.xpose.msra.mxu0 0.0
          %497 = vmatprep.subr.mxu0 0.0
          %498 = vmatpush1.xpose.msra.mxu0 0.0
          %499 = vmatprep.subr.mxu0 0.0
          %500 = vmatpush1.xpose.msra.mxu0 0.0
          %501 = vmatprep.subr.mxu0 0.0
          %502 = vmatpush1.xpose.msra.mxu0 0.0
          %503 = vmatprep.subr.mxu0 0.0
          %504 = vmatpush1.xpose.msra.mxu0 0.0
          %505 = vmatprep.subr.mxu0 0.0
          %506 = vmatpush1.xpose.msra.mxu0 0.0
          %507 = vmatprep.subr.mxu0 0.0
          %508 = vmatpush1.xpose.msra.mxu0 0.0
          %509 = vmatprep.subr.mxu0 0.0
          %510 = vmatpush1.xpose.msra.mxu0 0.0
          %511 = vmatprep.subr.mxu0 0.0
          %512 = vmatpush1.xpose.msra.mxu0 0.0
          %513 = vmatprep.subr.mxu0 0.0
          %514 = vmatpush1.xpose.msra.mxu0 0.0
          %515 = vmatprep.subr.mxu0 0.0
          %516 = vmatpush1.xpose.msra.mxu0 0.0
          %517 = vmatprep.subr.mxu0 0.0
          %518 = vmatpush1.xpose.msra.mxu0 0.0
          %519 = vmatprep.subr.mxu0 0.0
          %520 = vmatpush1.xpose.msra.mxu0 0.0
          %521 = vmatprep.subr.mxu0 0.0
          %522 = vmatpush1.xpose.msra.mxu0 0.0
          %523 = vmatprep.subr.mxu0 0.0
          %524 = vmatpush1.xpose.msra.mxu0 0.0
          %525 = vmatprep.subr.mxu0 0.0
          %526 = vmatpush1.xpose.msra.mxu0 0.0
          %527 = vmatprep.subr.mxu0 0.0
          %528 = vmatpush1.xpose.msra.mxu0 0.0
          %529 = vmatprep.subr.mxu0 0.0
          %530 = vmatpush1.xpose.msra.mxu0 0.0
          %531 = vmatprep.subr.mxu0 0.0
          %532 = vmatpush1.xpose.msra.mxu0 0.0
          %533 = vmatprep.subr.mxu0 0.0
          %534 = vmatpush1.xpose.msra.mxu0 0.0
          %535 = vmatprep.subr.mxu0 0.0
          %536 = vmatpush1.xpose.msra.mxu0 0.0
          %537 = vmatprep.subr.mxu0 0.0
          %538 = vmatpush1.xpose.msra.mxu0 0.0
          %539 = vmatprep.subr.mxu0 0.0
          %540 = vmatpush1.xpose.msra.mxu0 0.0
          %541 = vmatprep.subr.mxu0 0.0
          %542 = vmatpush1.xpose.msra.mxu0 0.0
          %543 = vmatprep.subr.mxu0 0.0
          %544 = vmatpush1.xpose.msra.mxu0 0.0
          %545 = vmatprep.subr.mxu0 0.0
          %546 = vmatpush1.xpose.msra.mxu0 0.0
          %547 = vmatprep.subr.mxu0 0.0
          %548 = vmatpush1.xpose.msra.mxu0 0.0
          %549 = vmatprep.subr.mxu0 0.0
          %550 = vmatpush1.xpose.msra.mxu0 0.0
          %551 = vmatprep.subr.mxu0 0.0
          %552 = vmatpush1.xpose.msra.mxu0 0.0
          %553 = vmatprep.mubr.f32.mxu0 0.0
          %554 = vmatmul.mubr.f32.gmra.mrb[0].mxu0 %v487
          %v555 = vpop.f32.mrb[0].mxu0
          %v556 = vadd.f32 0.0, %v555
          %v557 = vpop.f32.mrb[0].mxu0
          %558 = vdwg.mxu0
          %v559 = vmul.f32 %v556, 0.25
          %v560 = vsel %vm253, %v559, -inf
          %561 = vmax.xlane.f32.xlu0 %v560
          %v562 = vpop.xlane.xlu0 %561
          %v563 = vsub.f32 %v559, %v562
          %v564 = vmul.f32 %v563, 1.442695
          %v565 = vpow.pop %v564
          %v566 = vsel %vm253, %v565, 0.0
          %567 = vadd.xlane.f32.xlu0 %v566
          %v568 = vpop.xlane.xlu0 %567
          %v569 = vrcp.pop %v568
          %v570 = vmul.f32 %v565, %v569
          %v572 = vsel %vm253, %v570, 0
          %574 = vmatprep.subr.mxu0 0.0
          %575 = vmatpush1.msra.mxu0 %v484
          %576 = vmatprep.subr.mxu0 0.0
          %577 = vmatpush1.msra.mxu0 0.0
          %578 = vmatprep.subr.mxu0 0.0
          %579 = vmatpush1.msra.mxu0 0.0
          %580 = vmatprep.subr.mxu0 0.0
          %581 = vmatpush1.msra.mxu0 0.0
          %582 = vmatprep.subr.mxu0 0.0
          %583 = vmatpush1.msra.mxu0 0.0
          %584 = vmatprep.subr.mxu0 0.0
          %585 = vmatpush1.msra.mxu0 0.0
          %586 = vmatprep.subr.mxu0 0.0
          %587 = vmatpush1.msra.mxu0 0.0
          %588 = vmatprep.subr.mxu0 0.0
          %589 = vmatpush1.msra.mxu0 0.0
          %590 = vmatprep.subr.mxu0 0.0
          %591 = vmatpush1.msra.mxu0 0.0
          %592 = vmatprep.subr.mxu0 0.0
          %593 = vmatpush1.msra.mxu0 0.0
          %594 = vmatprep.subr.mxu0 0.0
          %595 = vmatpush1.msra.mxu0 0.0
          %596 = vmatprep.subr.mxu0 0.0
          %597 = vmatpush1.msra.mxu0 0.0
          %598 = vmatprep.subr.mxu0 0.0
          %599 = vmatpush1.msra.mxu0 0.0
          %600 = vmatprep.subr.mxu0 0.0
          %601 = vmatpush1.msra.mxu0 0.0
          %602 = vmatprep.subr.mxu0 0.0
          %603 = vmatpush1.msra.mxu0 0.0
          %604 = vmatprep.subr.mxu0 0.0
          %605 = vmatpush1.msra.mxu0 0.0
          %606 = vmatprep.subr.mxu0 0.0
          %607 = vmatpush1.msra.mxu0 0.0
          %608 = vmatprep.subr.mxu0 0.0
          %609 = vmatpush1.msra.mxu0 0.0
          %610 = vmatprep.subr.mxu0 0.0
          %611 = vmatpush1.msra.mxu0 0.0
          %612 = vmatprep.subr.mxu0 0.0
          %613 = vmatpush1.msra.mxu0 0.0
          %614 = vmatprep.subr.mxu0 0.0
          %615 = vmatpush1.msra.mxu0 0.0
          %616 = vmatprep.subr.mxu0 0.0
          %617 = vmatpush1.msra.mxu0 0.0
          %618 = vmatprep.subr.mxu0 0.0
          %619 = vmatpush1.msra.mxu0 0.0
          %620 = vmatprep.subr.mxu0 0.0
          %621 = vmatpush1.msra.mxu0 0.0
          %622 = vmatprep.subr.mxu0 0.0
          %623 = vmatpush1.msra.mxu0 0.0
          %624 = vmatprep.subr.mxu0 0.0
          %625 = vmatpush1.msra.mxu0 0.0
          %626 = vmatprep.subr.mxu0 0.0
          %627 = vmatpush1.msra.mxu0 0.0
          %628 = vmatprep.subr.mxu0 0.0
          %629 = vmatpush1.msra.mxu0 0.0
          %630 = vmatprep.subr.mxu0 0.0
          %631 = vmatpush1.msra.mxu0 0.0
          %632 = vmatprep.subr.mxu0 0.0
          %633 = vmatpush1.msra.mxu0 0.0
          %634 = vmatprep.subr.mxu0 0.0
          %635 = vmatpush1.msra.mxu0 0.0
          %636 = vmatprep.subr.mxu0 0.0
          %637 = vmatpush1.msra.mxu0 0.0
          %638 = vmatprep.mubr.f32.mxu0 0.0
          %639 = vmatmul.mubr.f32.gmra.mrb[0].mxu0 %v572
          %v640 = vpop.f32.mrb[0].mxu0
          %v641 = vadd.f32 0.0, %v640
          %v642 = vpop.f32.mrb[0].mxu0
          %643 = vdwg.mxu0
          %s644 = scalar_lea.vmem [#allocation3], %s236
          %645 = vst.msk [vmem:[%s644] sm:$0xff] %vm485, %v641
        $region45: #{channel_attention_1d.1} parent=39 // loop_footer
          %s235 = sadd.s32 1, %s231
        $region46: #{channel_attention_1d.1} parent=39 // loop_footer_branch
          %230 = sbr.rel target = $region42
        $region47: #{channel_attention_1d.1} parent=39 // loop_exit
          _
        %v646 = vld [vmem:[#allocation3] sm:$0xff]
        %v647 = vld [vmem:[#allocation3 + $0x8] sm:$0xff]
        %v648 = vld [vmem:[%s3] sm:$0xff]
        %v649 = vld [vmem:[%s3 + $0x8] sm:$0xff]
        %v651 = vlaneseq
        %v652 = vshrl.u32 %v651, 7
        %v653 = vsub.s32 0, %v652
        %v654 = vrot.slane %v227, %v653
        %vm656 = vcmask 130048
        %v658 = vsel %vm656, %v646, 0
        %v661 = vsel %vm656, %v647, 0
        %663 = vmatprep.subr.mxu0 0.0
        %664 = vmatpush1.msra.mxu0 %v648
        %665 = vmatprep.subr.mxu0 0.0
        %666 = vmatpush1.msra.mxu0 %v649
        %667 = vmatprep.subr.mxu0 0.0
        %668 = vmatpush1.msra.mxu0 0.0
        %669 = vmatprep.subr.mxu0 0.0
        %670 = vmatpush1.msra.mxu0 0.0
        %671 = vmatprep.subr.mxu0 0.0
        %672 = vmatpush1.msra.mxu0 0.0
        %673 = vmatprep.subr.mxu0 0.0
        %674 = vmatpush1.msra.mxu0 0.0
        %675 = vmatprep.subr.mxu0 0.0
        %676 = vmatpush1.msra.mxu0 0.0
        %677 = vmatprep.subr.mxu0 0.0
        %678 = vmatpush1.msra.mxu0 0.0
        %679 = vmatprep.subr.mxu0 0.0
        %680 = vmatpush1.msra.mxu0 0.0
        %681 = vmatprep.subr.mxu0 0.0
        %682 = vmatpush1.msra.mxu0 0.0
        %683 = vmatprep.subr.mxu0 0.0
        %684 = vmatpush1.msra.mxu0 0.0
        %685 = vmatprep.subr.mxu0 0.0
        %686 = vmatpush1.msra.mxu0 0.0
        %687 = vmatprep.subr.mxu0 0.0
        %688 = vmatpush1.msra.mxu0 0.0
        %689 = vmatprep.subr.mxu0 0.0
        %690 = vmatpush1.msra.mxu0 0.0
        %691 = vmatprep.subr.mxu0 0.0
        %692 = vmatpush1.msra.mxu0 0.0
        %693 = vmatprep.subr.mxu0 0.0
        %694 = vmatpush1.msra.mxu0 0.0
        %695 = vmatprep.subr.mxu0 0.0
        %696 = vmatpush1.msra.mxu0 0.0
        %697 = vmatprep.subr.mxu0 0.0
        %698 = vmatpush1.msra.mxu0 0.0
        %699 = vmatprep.subr.mxu0 0.0
        %700 = vmatpush1.msra.mxu0 0.0
        %701 = vmatprep.subr.mxu0 0.0
        %702 = vmatpush1.msra.mxu0 0.0
        %703 = vmatprep.subr.mxu0 0.0
        %704 = vmatpush1.msra.mxu0 0.0
        %705 = vmatprep.subr.mxu0 0.0
        %706 = vmatpush1.msra.mxu0 0.0
        %707 = vmatprep.subr.mxu0 0.0
        %708 = vmatpush1.msra.mxu0 0.0
        %709 = vmatprep.subr.mxu0 0.0
        %710 = vmatpush1.msra.mxu0 0.0
        %711 = vmatprep.subr.mxu0 0.0
        %712 = vmatpush1.msra.mxu0 0.0
        %713 = vmatprep.subr.mxu0 0.0
        %714 = vmatpush1.msra.mxu0 0.0
        %715 = vmatprep.subr.mxu0 0.0
        %716 = vmatpush1.msra.mxu0 0.0
        %717 = vmatprep.subr.mxu0 0.0
        %718 = vmatpush1.msra.mxu0 0.0
        %719 = vmatprep.subr.mxu0 0.0
        %720 = vmatpush1.msra.mxu0 0.0
        %721 = vmatprep.subr.mxu0 0.0
        %722 = vmatpush1.msra.mxu0 0.0
        %723 = vmatprep.subr.mxu0 0.0
        %724 = vmatpush1.msra.mxu0 0.0
        %725 = vmatprep.subr.mxu0 0.0
        %726 = vmatpush1.msra.mxu0 0.0
        %727 = vmatprep.mubr.f32.mxu0 0.0
        %728 = vmatmul.mubr.f32.gmra.mrb[0].mxu0 %v658
        %v729 = vpop.f32.mrb[0].mxu0
        %v730 = vadd.f32 %v654, %v729
        %v731 = vpop.f32.mrb[0].mxu0
        %732 = vmatprep.mubr.f32.mxu0 0.0
        %733 = vmatmul.mubr.f32.gmra.mrb[0].mxu0 %v661
        %v734 = vpop.f32.mrb[0].mxu0
        %v735 = vadd.f32 %v654, %v734
        %v736 = vpop.f32.mrb[0].mxu0
        %737 = vdwg.mxu0
        %738 = vst.msk [vmem:[%s218] sm:$0xff] %vm656, %v730
        %739 = vst.msk [vmem:[%s218 + $0x8] sm:$0xff] %vm656, %v735
        %s740 = sand.u32 %s137, 1
        %s741 = scalar_lea.sflag [#allocation5], %s740
        %s742 = sand.u32 %s137, 1
        %s743 = smul.addr %s742, 16
        %s744 = scalar_lea.vmem [#allocation4], %s743
        // Predicated region
        $region48: #{channel_attention_1d.1} parent=39 // pred_check
          %p745 = pneg %p147
        $region49: #{channel_attention_1d.1} parent=39 // pred_check_branch
          %747 = sbr.rel (%p745) target = $region51
        $region50: #{channel_attention_1d.1} parent=39 // pred_region
          %s748 = smul.u32 2, %s19
          %s750 = ssub.s32 256, 256
          %751 = vsyncadd %s741, %s750
          %s752 = smul.addr %s748, 128
          %s753 = scalar_lea.hbm %s5, %s752
          %s754 = sshll.u32 %s744, 4
          %s755 = int_to_ptr.vmem [resolvable:$true] %s754
          %760 = dma.vmem_to_hbm [thread:$0]  %s755, 256, %s753, %s741, 128, 128, 8
        $region51: #{channel_attention_1d.1} parent=39 // pred_fallthru
          _
      $region40: #{channel_attention_1d.1} parent=5 // pred_fallthru
        _
      %p761 = scmp.le.s32.totalorder 2, %s14
      // Predicated region
      $region52: #{channel_attention_1d.1} parent=5 // pred_check
        %p762 = pneg %p761
      $region53: #{channel_attention_1d.1} parent=5 // pred_check_branch
        %764 = sbr.rel (%p762) target = $region55
      $region54: #{channel_attention_1d.1} parent=5 // pred_region
        %s765 = ssub.s32 %s14, 2
        // Predicated region
        $region56: #{channel_attention_1d.1} parent=54 // pred_check
          %p766 = pneg %p153
        $region57: #{channel_attention_1d.1} parent=54 // pred_check_branch
          %768 = sbr.rel (%p766) target = $region59
        $region58: #{channel_attention_1d.1} parent=54 // pred_region
          %s769 = sand.u32 %s138, 1
          %s770 = scalar_lea.sflag [#allocation5], %s769
          %s771 = sand.u32 %s138, 1
          %s772 = smul.addr %s771, 16
          %s773 = scalar_lea.vmem [#allocation4], %s772
          %774 = dma.done %s770, 256
        $region59: #{channel_attention_1d.1} parent=54 // pred_fallthru
          _
      $region55: #{channel_attention_1d.1} parent=5 // pred_fallthru
        _
    $region6: #{channel_attention_1d.1} parent=1 // loop_footer
      %s18 = sadd.s32 1, %s14
    $region7: #{channel_attention_1d.1} parent=1 // loop_footer_branch
      %13 = sbr.rel target = $region3
    $region8: #{channel_attention_1d.1} parent=1 // loop_exit
      _
    %775 = vsyncpa [#allocation5], 1
    %s776 = scalar_lea.sflag [#allocation5], 1
    %777 = vsyncpa %s776, 1

</llo_original>
